<compile_context>
chip_gen: v6e
topology: v6e:2x2x1
jax: 0.10.0
libtpu: 0.0.40
codegen_flags: <defaults>
</compile_context>

<pallas_src>
import functools

import jax
import jax.numpy as jnp
from jax import lax
from jax.experimental import pallas as pl
from jax.experimental.pallas import tpu as pltpu

GAMMA = 1.5
ALPHA = 0.25

LANES = 128
SUBLANES = 8
CHUNK_ROWS = 64            # 64x128 f32 chunk = 8 vregs/array -> no spills in the loop body
MAX_TILE_ROWS = 4096       # 4096*128*4B = 2 MiB per f32 input tile (8 MiB double-buffered)
NUM_SHARDS = 2             # leading "parallel" grid axis (2 TCs on v7x; harmless elsewhere)


def _cdiv(a, b):
    return (a + b - 1) // b


def _round_up(a, b):
    return _cdiv(a, b) * b


def _row_align(*dtypes):
    """Sublane alignment for block rows, dtype-packing aware (8 f32, 16 bf16, 32 int8)."""
    pack = 1
    for dt in dtypes:
        pack = max(pack, 4 // max(1, jnp.dtype(dt).itemsize))
    return SUBLANES * pack


def _focal_elementwise(x, t, gamma, alpha):
    """Per-element focal loss (f32). One exp + one approx-recip shared by BCE & sigmoid."""
    e = jnp.exp(-jnp.abs(x))                  # single EUP exp per element
    d = 1.0 + e
    r = pl.reciprocal(d, approx=True)         # EUP vrcp
    r = r * (2.0 - d * r)                     # one Newton step (VPU) -> ~f32-exact 1/(1+e)
    # NOTE: drop the Newton step on VALU-bound v6e/v7x only after re-validating rtol.
    sig = jnp.where(x >= 0.0, r, e * r)       # sigmoid(x) without a second exp

    # Numerically-stable BCEWithLogits (reduction='none'):
    #   loss = max(x, 0) - x*t + log(1 + exp(-|x|))
    bce = jnp.maximum(x, 0.0) - x * t + jnp.log1p(e)

    # Focal modulation: z = 1 - p_t (clamped vs rounding), alpha factor as fused affine.
    z = jnp.maximum(sig + t * (1.0 - 2.0 * sig), 0.0)
    if gamma == 1.5:
        mod = z * jnp.sqrt(z)                 # z**1.5 without pow
    else:
        mod = z ** gamma                      # generic (slower: exp+log) path
    af = (1.0 - alpha) + t * (2.0 * alpha - 1.0)
    return bce * (af * mod)


def _focal_loss_kernel(pred_ref, true_ref, out_ref, *,
                       gamma, alpha, tile_rows, chunk_rows, steps, total_blocks,
                       n_full_rows, rem_lanes, has_tail_mask, has_skip):
    c = pl.program_id(0)
    i = pl.program_id(1)
    block_idx = c * steps + i

    @pl.when(i == 0)
    def _init():
        out_ref[...] = jnp.zeros_like(out_ref)

    num_chunks = tile_rows // chunk_rows
    fold = chunk_rows // SUBLANES

    def chunk_partial(r0, masked):
        x = pred_ref[pl.ds(r0, chunk_rows), :].astype(jnp.float32)
        t = true_ref[pl.ds(r0, chunk_rows), :].astype(jnp.float32)
        loss = _focal_elementwise(x, t, gamma, alpha)
        if masked:
            # Mask the ragged tail (partial last block rows and/or partial last row)
            # so out-of-range / padded elements contribute exactly zero.
            row = (block_idx * tile_rows + r0
                   + lax.broadcasted_iota(jnp.int32, (chunk_rows, LANES), 0))
            valid = row < n_full_rows
            if rem_lanes:
                lane = lax.broadcasted_iota(jnp.int32, (chunk_rows, LANES), 1)
                valid = valid | ((row == n_full_rows) & (lane < rem_lanes))
            loss = jnp.where(valid, loss, 0.0)
        # (chunk_rows,128) -> (fold,8,128) -> sum over fold: elementwise vreg adds (VPU only).
        return jnp.sum(loss.reshape(fold, SUBLANES, LANES), axis=0)

    def accumulate(masked):
        if num_chunks == 1:
            partial = chunk_partial(0, masked)
        else:
            def body(ci, carry):
                r0 = pl.multiple_of(ci * chunk_rows, chunk_rows)
                return carry + chunk_partial(r0, masked)
            partial = lax.fori_loop(
                0, num_chunks, body,
                jnp.zeros((SUBLANES, LANES), jnp.float32),
                unroll=(num_chunks <= 8))
        out_ref[0] += partial

    if has_tail_mask:
        @pl.when(block_idx < total_blocks - 1)
        def _main():
            accumulate(False)

        @pl.when(block_idx == total_blocks - 1)
        def _tail():
            accumulate(True)
        # block_idx > total_blocks - 1 (clamped duplicate blocks): skipped.
    elif has_skip:
        @pl.when(block_idx < total_blocks)
        def _main():
            accumulate(False)
    else:
        accumulate(False)


def focal_loss(pred, true, gamma=GAMMA, alpha=ALPHA):
    """Focal loss with mean reduction (BCEWithLogitsLoss default). Any shape/dtype."""
    assert pred.shape == true.shape
    n_elems = pred.size
    if n_elems == 0:
        return jnp.float32(0.0)   # guard divide-by-zero

    row_align = _row_align(pred.dtype, true.dtype)
    align_elems = row_align * LANES

    pred_flat = pred.reshape(-1)
    true_flat = true.reshape(-1)
    padded_elems = _round_up(n_elems, align_elems)
    if padded_elems != n_elems:
        # TODO(synk): only hit when n_elems isn't a multiple of row_align*128; the padded
        # values are masked out in-kernel, the pad exists only so the lane-dense reshape
        # is legal. Could be removed with an element-granular 1-D BlockSpec.
        pad = padded_elems - n_elems
        pred_flat = jnp.pad(pred_flat, (0, pad))
        true_flat = jnp.pad(true_flat, (0, pad))
    rows = padded_elems // LANES
    # Free (bitcast) reshape in the aligned case; native dtype kept for the DMA.
    pred2d = pred_flat.reshape(rows, LANES)
    true2d = true_flat.reshape(rows, LANES)

    if rows >= NUM_SHARDS * CHUNK_ROWS:
        chunk_rows = CHUNK_ROWS
        tile_rows = min(MAX_TILE_ROWS, _round_up(_cdiv(rows, NUM_SHARDS), CHUNK_ROWS))
    else:
        tile_rows = min(rows, _round_up(_cdiv(rows, NUM_SHARDS), row_align))
        chunk_rows = tile_rows

    total_blocks = _cdiv(rows, tile_rows)
    num_shards = min(NUM_SHARDS, total_blocks)
    steps = _cdiv(total_blocks, num_shards)
    last_block = total_blocks - 1

    # Does the last block contain out-of-range rows or a partial last row?
    has_tail_mask = (n_elems < rows * LANES) or (total_blocks * tile_rows > rows)
    # Are there clamped duplicate blocks (grid slots beyond total_blocks)?
    has_skip = (num_shards * steps > total_blocks)

    def in_map(c, i):
        # Clamp so the DMA of any surplus grid slot stays in bounds (compute is skipped).
        return (jnp.minimum(c * steps + i, last_block), 0)

    kernel = functools.partial(
        _focal_loss_kernel,
        gamma=gamma, alpha=alpha,
        tile_rows=tile_rows, chunk_rows=chunk_rows, steps=steps,
        total_blocks=total_blocks,
        n_full_rows=n_elems // LANES, rem_lanes=n_elems % LANES,
        has_tail_mask=has_tail_mask, has_skip=has_skip,
    )

    bytes_accessed = (n_elems * (pred.dtype.itemsize + true.dtype.itemsize)
                      + num_shards * SUBLANES * LANES * 4)
    cost = pl.CostEstimate(flops=20 * n_elems, transcendentals=4 * n_elems,
                           bytes_accessed=int(bytes_accessed))

    partials = pl.pallas_call(
        kernel,
        out_shape=jax.ShapeDtypeStruct((num_shards, SUBLANES, LANES), jnp.float32),
        grid_spec=pltpu.PrefetchScalarGridSpec(
            num_scalar_prefetch=0,
            grid=(num_shards, steps),
            in_specs=[
                pl.BlockSpec((tile_rows, LANES), in_map),
                pl.BlockSpec((tile_rows, LANES), in_map),
            ],
            # Per-shard (8,128) partial-sum block, revisited across the inner axis only.
            out_specs=pl.BlockSpec((1, SUBLANES, LANES), lambda c, i: (c, 0, 0)),
        ),
        compiler_params=pltpu.CompilerParams(
            dimension_semantics=("parallel", "arbitrary"),
            vmem_limit_bytes=32 * 1024 * 1024,
        ),
        cost_estimate=cost,
    )(pred2d, true2d)

    # TODO(synk): only reduction='mean' (the BCEWithLogitsLoss default) is implemented;
    # 'sum'/'none' would need a different epilogue / per-element output.
    return jnp.sum(partials) / jnp.float32(n_elems)


def _reference_focal_loss(pred, true, gamma=GAMMA, alpha=ALPHA):
    x = pred.astype(jnp.float32)
    t = true.astype(jnp.float32)
    bce = jnp.maximum(x, 0.0) - x * t + jnp.log1p(jnp.exp(-jnp.abs(x)))
    p = jax.nn.sigmoid(x)
    p_t = t * p + (1 - t) * (1 - p)
    af = t * alpha + (1 - t) * (1 - alpha)
    mf = (1.0 - p_t) ** gamma
    return jnp.mean(bce * af * mf)


if __name__ == "__main__":
    key = jax.random.PRNGKey(0)
    k1, k2 = jax.random.split(key)
    # NCHW logits and binary targets, small shapes: (2, 4, 16, 16)
    pred = jax.random.normal(k1, (2, 4, 16, 16), dtype=jnp.float32) * 2.0
    true = (jax.random.uniform(k2, (2, 4, 16, 16)) > 0.5).astype(jnp.float32)

    out = focal_loss(pred, true)
    out = jax.block_until_ready(out)

    ref = _reference_focal_loss(pred, true)
    assert jnp.allclose(out, ref, rtol=1e-4, atol=1e-6), (out, ref)
    print("KERNEL_OK")
</pallas_src>

<mosaic_0001>
module attributes {stable_mosaic.version = 11 : i64} {
  func.func @_focal_loss_kernel(%arg0: i32, %arg1: i32, %arg2: memref<8x128xf32, #tpu.memory_space<vmem>>, %arg3: memref<8x128xf32, #tpu.memory_space<vmem>>, %arg4: memref<1x8x128xf32, #tpu.memory_space<vmem>>) attributes {dimension_semantics = [#tpu.dimension_semantics<parallel>, #tpu.dimension_semantics<arbitrary>], iteration_bounds = array<i64: 2, 1>, scalar_prefetch = 0 : i64, scratch_operands = 0 : i64, tpu.core_type = #tpu.core_type<tc>, window_params = [{transform_indices = @transform_0, window_bounds = array<i64: 8, 128>}, {transform_indices = @transform_1, window_bounds = array<i64: 8, 128>}, {transform_indices = @transform_2, window_bounds = array<i64: 1, 8, 128>}]} {
    %c0_i32 = arith.constant 0 : i32
    %0 = arith.cmpi eq, %arg1, %c0_i32 : i32
    %1 = arith.extui %0 : i1 to i32
    %c0_i32_0 = arith.constant 0 : i32
    %2 = arith.cmpi ne, %1, %c0_i32_0 : i32
    scf.if %2 {
      %cst_20 = arith.constant 0.000000e+00 : f32
      %50 = vector.broadcast %cst_20 : f32 to vector<1x8x128xf32>
      %c0_21 = arith.constant 0 : index
      %c0_22 = arith.constant 0 : index
      %c0_23 = arith.constant 0 : index
      %51 = vector.load %arg4[%c0_21, %c0_22, %c0_23] : memref<1x8x128xf32, #tpu.memory_space<vmem>>, vector<1x8x128xf32>
      tpu.vector_store %arg4[%c0_21, %c0_22, %c0_23], %50 {strides = array<i32>} : memref<1x8x128xf32, #tpu.memory_space<vmem>>, vector<1x8x128xf32>,
    } else {
    }
    %c0 = arith.constant 0 : index
    %c0_1 = arith.constant 0 : index
    %3 = vector.load %arg2[%c0, %c0_1] : memref<8x128xf32, #tpu.memory_space<vmem>>, vector<8x128xf32>
    %c0_2 = arith.constant 0 : index
    %c0_3 = arith.constant 0 : index
    %4 = vector.load %arg3[%c0_2, %c0_3] : memref<8x128xf32, #tpu.memory_space<vmem>>, vector<8x128xf32>
    %5 = math.absf %3 : vector<8x128xf32>
    %cst = arith.constant 0.000000e+00 : f32
    %6 = vector.broadcast %cst : f32 to vector<8x128xf32>
    %7 = arith.subf %6, %5 : vector<8x128xf32>
    %8 = math.exp %7 : vector<8x128xf32>
    %cst_4 = arith.constant 1.000000e+00 : f32
    %9 = vector.broadcast %cst_4 : f32 to vector<8x128xf32>
    %10 = arith.addf %9, %8 : vector<8x128xf32>
    %11 = tpu.reciprocal %10 {approx = true} : vector<8x128xf32> -> vector<8x128xf32>
    %12 = arith.mulf %10, %11 : vector<8x128xf32>
    %cst_5 = arith.constant 2.000000e+00 : f32
    %13 = vector.broadcast %cst_5 : f32 to vector<8x128xf32>
    %14 = arith.subf %13, %12 : vector<8x128xf32>
    %15 = arith.mulf %11, %14 : vector<8x128xf32>
    %cst_6 = arith.constant 0.000000e+00 : f32
    %16 = vector.broadcast %cst_6 : f32 to vector<8x128xf32>
    %17 = arith.cmpf oge, %3, %16 : vector<8x128xf32>
    %18 = arith.mulf %8, %15 : vector<8x128xf32>
    %19 = arith.select %17, %15, %18 : vector<8x128xi1>, vector<8x128xf32>
    %cst_7 = arith.constant 0.000000e+00 : f32
    %20 = vector.broadcast %cst_7 : f32 to vector<8x128xf32>
    %21 = arith.maximumf %3, %20 : vector<8x128xf32>
    %22 = arith.mulf %3, %4 : vector<8x128xf32>
    %23 = arith.subf %21, %22 : vector<8x128xf32>
    %24 = math.log1p %8 : vector<8x128xf32>
    %25 = arith.addf %23, %24 : vector<8x128xf32>
    %cst_8 = arith.constant 2.000000e+00 : f32
    %26 = vector.broadcast %cst_8 : f32 to vector<8x128xf32>
    %27 = arith.mulf %26, %19 : vector<8x128xf32>
    %cst_9 = arith.constant 1.000000e+00 : f32
    %28 = vector.broadcast %cst_9 : f32 to vector<8x128xf32>
    %29 = arith.subf %28, %27 : vector<8x128xf32>
    %30 = arith.mulf %4, %29 : vector<8x128xf32>
    %31 = arith.addf %19, %30 : vector<8x128xf32>
    %cst_10 = arith.constant 0.000000e+00 : f32
    %32 = vector.broadcast %cst_10 : f32 to vector<8x128xf32>
    %33 = arith.maximumf %31, %32 : vector<8x128xf32>
    %34 = math.sqrt %33 : vector<8x128xf32>
    %35 = arith.mulf %33, %34 : vector<8x128xf32>
    %cst_11 = arith.constant -5.000000e-01 : f32
    %36 = vector.broadcast %cst_11 : f32 to vector<8x128xf32>
    %37 = arith.mulf %4, %36 : vector<8x128xf32>
    %cst_12 = arith.constant 7.500000e-01 : f32
    %38 = vector.broadcast %cst_12 : f32 to vector<8x128xf32>
    %39 = arith.addf %38, %37 : vector<8x128xf32>
    %40 = arith.mulf %39, %35 : vector<8x128xf32>
    %41 = arith.mulf %25, %40 : vector<8x128xf32>
    %42 = vector.shape_cast %41 : vector<8x128xf32> to vector<1x8x128xf32>
    %cst_13 = arith.constant dense<0.000000e+00> : vector<8x128xf32>
    %43 = vector.multi_reduction <add>, %42, %cst_13 [0] : vector<1x8x128xf32> to vector<8x128xf32>
    %c0_14 = arith.constant 0 : index
    %c0_15 = arith.constant 0 : index
    %c0_16 = arith.constant 0 : index
    %44 = vector.load %arg4[%c0_14, %c0_15, %c0_16] : memref<1x8x128xf32, #tpu.memory_space<vmem>>, vector<1x8x128xf32>
    %45 = vector.shape_cast %44 : vector<1x8x128xf32> to vector<8x128xf32>
    %46 = arith.addf %45, %43 : vector<8x128xf32>
    %c0_17 = arith.constant 0 : index
    %c0_18 = arith.constant 0 : index
    %c0_19 = arith.constant 0 : index
    %47 = vector.load %arg4[%c0_17, %c0_18, %c0_19] : memref<1x8x128xf32, #tpu.memory_space<vmem>>, vector<1x8x128xf32>
    %48 = vector.shape_cast %47 : vector<1x8x128xf32> to vector<8x128xf32>
    %49 = vector.shape_cast %46 : vector<8x128xf32> to vector<1x8x128xf32>
    tpu.vector_store %arg4[%c0_17, %c0_18, %c0_19], %49 {strides = array<i32>} : memref<1x8x128xf32, #tpu.memory_space<vmem>>, vector<1x8x128xf32>,
    return
  }
  func.func @transform_0(%arg0: i32, %arg1: i32) -> (i32, i32) {
    %c1_i32 = arith.constant 1 : i32
    %0 = arith.muli %arg0, %c1_i32 : i32
    %1 = arith.addi %0, %arg1 : i32
    %c1_i32_0 = arith.constant 1 : i32
    %2 = arith.minsi %1, %c1_i32_0 : i32
    %c0_i32 = arith.constant 0 : i32
    %c0_i32_1 = arith.constant 0 : i32
    return %2, %c0_i32 : i32, i32
  }
  func.func @transform_1(%arg0: i32, %arg1: i32) -> (i32, i32) {
    %c1_i32 = arith.constant 1 : i32
    %0 = arith.muli %arg0, %c1_i32 : i32
    %1 = arith.addi %0, %arg1 : i32
    %c1_i32_0 = arith.constant 1 : i32
    %2 = arith.minsi %1, %c1_i32_0 : i32
    %c0_i32 = arith.constant 0 : i32
    %c0_i32_1 = arith.constant 0 : i32
    return %2, %c0_i32 : i32, i32
  }
  func.func @transform_2(%arg0: i32, %arg1: i32) -> (i32, i32, i32) {
    %c0_i32 = arith.constant 0 : i32
    %c0_i32_0 = arith.constant 0 : i32
    %c0_i32_1 = arith.constant 0 : i32
    return %arg0, %c0_i32, %c0_i32_0 : i32, i32, i32
  }
}

</mosaic_0001>

<llo_original>
// kernel: tpu_custom_call.1
$region0: #{tpu_custom_call.1}
  #allocation0 [shape = 'u32[]', space=smem, size = 0x4, offset = 0x4, fixed_abs, tag = 'smem constant byte address 0x4 - core index']
  #allocation1 [shape = 'u32[144,128]{1,0:T(1,128)}', space=vmem, size = 0x12000, scoped, tag = 'internal scratch']
  %s0 = inlined_call_operand.hbm [shape: f32[16,128], index: 0, kind: input, shape index: {}]
  %s1 = inlined_call_operand.hbm [shape: f32[16,128], index: 1, kind: input, shape index: {}]
  %s2 = inlined_call_operand.hbm [shape: f32[2,8,128], index: 2, kind: output, shape index: {}]
  %s3 = sld [smem:[#allocation0]]
  $region53: #{tpu_custom_call.1} parent=0
    _
  %s5 = ssub.s32 1, %s3
  %s6 = scalar_select 0, %s5, %s3
  $region1: #{tpu_custom_call.1} parent=0
    #allocation2 [shape = 'u8[8192]{0}', space=vmem, size = 0x2000, scoped, tag = 'input window, operand 0']
    #allocation3 [shape = 's32[2]{0}', space=sflag, size = 0x8, scoped, tag = 'scoped memory for tpu_custom_call.1']
    #allocation4 [shape = 's32[2]{0}', space=sflag, size = 0x8, scoped, tag = 'scoped memory for tpu_custom_call.1']
    #allocation5 [shape = 'u8[8192]{0}', space=vmem, size = 0x2000, scoped, tag = 'input window, operand 1']
    #allocation6 [shape = 's32[2]{0}', space=sflag, size = 0x8, scoped, tag = 'scoped memory for tpu_custom_call.1']
    #allocation7 [shape = 'u8[8192]{0}', space=vmem, size = 0x2000, scoped, tag = 'output window, operand 0']
    %7 = vsyncpa [#allocation3], 0
    %s8 = scalar_lea.sflag [#allocation3], 1
    %9 = vsyncpa %s8, 0
    %10 = vsyncpa [#allocation6], 0
    %s11 = scalar_lea.sflag [#allocation6], 1
    %12 = vsyncpa %s11, 0
    %13 = vsyncpa [#allocation4], 0
    %s14 = scalar_lea.sflag [#allocation4], 1
    %15 = vsyncpa %s14, 0
    loop: start=0, step=1, limit=4
    $region2: #{tpu_custom_call.1} parent=1 // loop_pre_header
      _
    $region3: #{tpu_custom_call.1} parent=1 // loop_header
      %s17 = sphi 0, %s21
      %p18 = scmp.ge.s32.totalorder %s17, 4
      %s24 = sphi 0, %s36
      %s25 = sphi 0, %s32
      %s26 = sphi 0, %s24
      %s27 = sphi 0, %s25
      %s28 = sphi 0, %s26
      %s29 = sphi 0, %s27
      %s45 = sphi 0, %s47
      %s48 = sphi 0, %s45
      %s49 = sphi 0, %s48
      %s65 = sphi 0, %s49
      %s77 = sphi 0, %s79
      %s80 = sphi 0, %s77
      %s81 = sphi 0, %s80
      %s97 = sphi 0, %s81
      %s103 = sphi 0, %s105
      %s106 = sphi 0, %s103
      %s107 = sphi 0, %s106
      %s123 = sphi 0, %s107
    $region4: #{tpu_custom_call.1} parent=1 // loop_header_branch
      %20 = sbr.rel (%p18) target = $region8
    $region5: #{tpu_custom_call.1} parent=1 // loop_body
      %s22 = ssub.s32 %s17, 1
      %s23 = ssub.s32 %s17, 2
      %s30 = sadd.s32 1, %s25
      %p31 = scmp.ge.s32.totalorder %s30, 1
      %s32 = scalar_select %p31, 0, %s30
      %s33 = sadd.s32 1, %s24
      %s34 = scalar_select %p31, %s33, %s24
      %p35 = scmp.ge.s32.totalorder %s34, 2
      %s36 = scalar_select %p35, 0, %s34
      %s37 = sadd.s32 %s24, %s25
      %p38 = scmp.lt.s32.totalorder %s37, 1
      %s39 = scalar_select %p38, %s37, 1
      %s40 = sadd.s32 %s36, %s32
      %p41 = scmp.lt.s32.totalorder %s40, 1
      %s42 = scalar_select %p41, %s40, 1
      %s43 = ssub.s32 %s39, %s42
      %p44 = scmp.eq.s32.totalorder %s43, 0
      %s46 = sadd.s32 %s45, 1
      %s47 = scalar_select %p44, %s45, %s46
      %p50 = pneg %p44
      %p51 = scmp.eq.s32.totalorder %s17, 1
      %p52 = por %p50, %p51
      %p53 = scmp.ne.s32.totalorder %s45, %s48
      %p54 = scmp.eq.s32.totalorder %s17, 0
      %p55 = por %p53, %p54
      %p56 = scmp.ne.s32.totalorder %s45, %s48
      %p57 = scmp.eq.s32.totalorder %s22, 1
      %p58 = por %p56, %p57
      %p59 = scmp.ne.s32.totalorder %s48, %s49
      %p60 = scmp.eq.s32.totalorder %s22, 0
      %p61 = por %p59, %p60
      %p62 = scmp.ne.s32.totalorder %s48, %s49
      %p63 = scmp.eq.s32.totalorder %s23, 1
      %p64 = por %p62, %p63
      %p66 = scmp.ne.s32.totalorder %s49, %s65
      %p67 = scmp.eq.s32.totalorder %s23, 0
      %p68 = por %p66, %p67
      %s69 = sadd.s32 %s24, %s25
      %p70 = scmp.lt.s32.totalorder %s69, 1
      %s71 = scalar_select %p70, %s69, 1
      %s72 = sadd.s32 %s36, %s32
      %p73 = scmp.lt.s32.totalorder %s72, 1
      %s74 = scalar_select %p73, %s72, 1
      %s75 = ssub.s32 %s71, %s74
      %p76 = scmp.eq.s32.totalorder %s75, 0
      %s78 = sadd.s32 %s77, 1
      %s79 = scalar_select %p76, %s77, %s78
      %p82 = pneg %p76
      %p83 = scmp.eq.s32.totalorder %s17, 1
      %p84 = por %p82, %p83
      %p85 = scmp.ne.s32.totalorder %s77, %s80
      %p86 = scmp.eq.s32.totalorder %s17, 0
      %p87 = por %p85, %p86
      %p88 = scmp.ne.s32.totalorder %s77, %s80
      %p89 = scmp.eq.s32.totalorder %s22, 1
      %p90 = por %p88, %p89
      %p91 = scmp.ne.s32.totalorder %s80, %s81
      %p92 = scmp.eq.s32.totalorder %s22, 0
      %p93 = por %p91, %p92
      %p94 = scmp.ne.s32.totalorder %s80, %s81
      %p95 = scmp.eq.s32.totalorder %s23, 1
      %p96 = por %p94, %p95
      %p98 = scmp.ne.s32.totalorder %s81, %s97
      %p99 = scmp.eq.s32.totalorder %s23, 0
      %p100 = por %p98, %p99
      %s101 = ssub.s32 %s24, %s36
      %p102 = scmp.eq.s32.totalorder %s101, 0
      %s104 = sadd.s32 %s103, 1
      %s105 = scalar_select %p102, %s103, %s104
      %p108 = pneg %p102
      %p109 = scmp.eq.s32.totalorder %s17, 1
      %p110 = por %p108, %p109
      %p111 = scmp.ne.s32.totalorder %s103, %s106
      %p112 = scmp.eq.s32.totalorder %s17, 0
      %p113 = por %p111, %p112
      %p114 = scmp.ne.s32.totalorder %s103, %s106
      %p115 = scmp.eq.s32.totalorder %s22, 1
      %p116 = por %p114, %p115
      %p117 = scmp.ne.s32.totalorder %s106, %s107
      %p118 = scmp.eq.s32.totalorder %s22, 0
      %p119 = por %p117, %p118
      %p120 = scmp.ne.s32.totalorder %s106, %s107
      %p121 = scmp.eq.s32.totalorder %s23, 1
      %p122 = por %p120, %p121
      %p124 = scmp.ne.s32.totalorder %s107, %s123
      %p125 = scmp.eq.s32.totalorder %s23, 0
      %p126 = por %p124, %p125
      %p127 = scmp.le.s32.totalorder 1, %s17
      %p128 = scmp.lt.s32.totalorder %s17, 3
      %p129 = pnand %p127, %p128
      %p130 = pneg %p129
      // Predicated region
      $region9: #{tpu_custom_call.1} parent=5 // pred_check
        _
      $region10: #{tpu_custom_call.1} parent=5 // pred_check_branch
        %132 = sbr.rel (%p129) target = $region12
      $region11: #{tpu_custom_call.1} parent=5 // pred_region
        %s133 = ssub.s32 %s17, 1
      $region12: #{tpu_custom_call.1} parent=5 // pred_fallthru
        _
      %p134 = scmp.lt.s32.totalorder %s17, 2
      // Predicated region
      $region13: #{tpu_custom_call.1} parent=5 // pred_check
        %p135 = pneg %p134
      $region14: #{tpu_custom_call.1} parent=5 // pred_check_branch
        %137 = sbr.rel (%p135) target = $region16
      $region15: #{tpu_custom_call.1} parent=5 // pred_region
        // Predicated region
        $region17: #{tpu_custom_call.1} parent=15 // pred_check
          %p138 = pneg %p55
        $region18: #{tpu_custom_call.1} parent=15 // pred_check_branch
          %140 = sbr.rel (%p138) target = $region20
        $region19: #{tpu_custom_call.1} parent=15 // pred_region
          %s141 = sand.u32 %s45, 1
          %s142 = scalar_lea.sflag [#allocation3], %s141
          %s143 = sand.u32 %s45, 1
          %s144 = smul.addr %s143, 8
          %s145 = scalar_lea.vmem [#allocation2], %s144
          %s146 = sadd.s32 %s24, %s25
          %p147 = scmp.lt.s32.totalorder %s146, 1
          %s148 = scalar_select %p147, %s146, 1
          %s150 = ssub.s32 128, 128
          %151 = vsyncadd %s142, %s150
          %s152 = smul.addr %s148, 128
          %s153 = scalar_lea.hbm %s0, %s152
          %s155 = sshll.u32 %s145, 4
          %s156 = int_to_ptr.vmem [resolvable:$true] %s155
          %158 = dma.hbm_to_vmem [thread:$0]  %s153, 128, %s156, %s142
        $region20: #{tpu_custom_call.1} parent=15 // pred_fallthru
          _
        // Predicated region
        $region21: #{tpu_custom_call.1} parent=15 // pred_check
          %p159 = pneg %p87
        $region22: #{tpu_custom_call.1} parent=15 // pred_check_branch
          %161 = sbr.rel (%p159) target = $region24
        $region23: #{tpu_custom_call.1} parent=15 // pred_region
          %s162 = sand.u32 %s77, 1
          %s163 = scalar_lea.sflag [#allocation6], %s162
          %s164 = sand.u32 %s77, 1
          %s165 = smul.addr %s164, 8
          %s166 = scalar_lea.vmem [#allocation5], %s165
          %s167 = sadd.s32 %s24, %s25
          %p168 = scmp.lt.s32.totalorder %s167, 1
          %s169 = scalar_select %p168, %s167, 1
          %s171 = ssub.s32 128, 128
          %172 = vsyncadd %s163, %s171
          %s173 = smul.addr %s169, 128
          %s174 = scalar_lea.hbm %s1, %s173
          %s176 = sshll.u32 %s166, 4
          %s177 = int_to_ptr.vmem [resolvable:$true] %s176
          %179 = dma.hbm_to_vmem [thread:$0]  %s174, 128, %s177, %s163
        $region24: #{tpu_custom_call.1} parent=15 // pred_fallthru
          _
      $region16: #{tpu_custom_call.1} parent=5 // pred_fallthru
        _
      %p180 = scmp.le.s32.totalorder 1, %s17
      %p181 = scmp.lt.s32.totalorder %s17, 3
      %p182 = pnand %p180, %p181
      %p183 = pneg %p182
      // Predicated region
      $region25: #{tpu_custom_call.1} parent=5 // pred_check
        _
      $region26: #{tpu_custom_call.1} parent=5 // pred_check_branch
        %185 = sbr.rel (%p182) target = $region28
      $region27: #{tpu_custom_call.1} parent=5 // pred_region
        %s186 = ssub.s32 %s17, 1
        %s187 = sand.u32 %s48, 1
        %s188 = scalar_lea.sflag [#allocation3], %s187
        %s189 = sand.u32 %s48, 1
        %s190 = smul.addr %s189, 8
        %s191 = scalar_lea.vmem [#allocation2], %s190
        // Predicated region
        $region29: #{tpu_custom_call.1} parent=27 // pred_check
          %p192 = pneg %p61
        $region30: #{tpu_custom_call.1} parent=27 // pred_check_branch
          %194 = sbr.rel (%p192) target = $region32
        $region31: #{tpu_custom_call.1} parent=27 // pred_region
          %195 = dma.done %s188, 128
        $region32: #{tpu_custom_call.1} parent=27 // pred_fallthru
          _
        %s196 = sand.u32 %s80, 1
        %s197 = scalar_lea.sflag [#allocation6], %s196
        %s198 = sand.u32 %s80, 1
        %s199 = smul.addr %s198, 8
        %s200 = scalar_lea.vmem [#allocation5], %s199
        // Predicated region
        $region33: #{tpu_custom_call.1} parent=27 // pred_check
          %p201 = pneg %p93
        $region34: #{tpu_custom_call.1} parent=27 // pred_check_branch
          %203 = sbr.rel (%p201) target = $region36
        $region35: #{tpu_custom_call.1} parent=27 // pred_region
          %204 = dma.done %s197, 128
        $region36: #{tpu_custom_call.1} parent=27 // pred_fallthru
          _
        %s205 = sand.u32 %s48, 1
        %s206 = scalar_lea.sflag [#allocation3], %s205
        %s207 = sand.u32 %s48, 1
        %s208 = smul.addr %s207, 8
        %s209 = scalar_lea.vmem [#allocation2], %s208
        %p210 = pneg %p61
        %p211 = pneg %p58
        %s212 = sand.u32 %s80, 1
        %s213 = scalar_lea.sflag [#allocation6], %s212
        %s214 = sand.u32 %s80, 1
        %s215 = smul.addr %s214, 8
        %s216 = scalar_lea.vmem [#allocation5], %s215
        %p217 = pneg %p93
        %p218 = pneg %p90
        %p219 = pneg %p119
        %p220 = pneg %p116
        %s221 = sand.u32 %s106, 1
        %s222 = scalar_lea.sflag [#allocation4], %s221
        %s223 = sand.u32 %s106, 1
        %s224 = smul.addr %s223, 8
        %s225 = scalar_lea.vmem [#allocation7], %s224
        %s226 = sadd.s32 %s26, %s27
        %p227 = scmp.lt.s32.totalorder %s226, 1
        %s228 = scalar_select %p227, %s226, 1
        %s229 = sadd.s32 %s26, %s27
        %p230 = scmp.lt.s32.totalorder %s229, 1
        %s231 = scalar_select %p230, %s229, 1
        %p232 = scmp.eq.s32.totalorder %s27, 0
        // Predicated region
        $region37: #{tpu_custom_call.1} parent=27 // pred_check
          %p233 = pneg %p232
        $region38: #{tpu_custom_call.1} parent=27 // pred_check_branch
          %235 = sbr.rel (%p233) target = $region40
        $region39: #{tpu_custom_call.1} parent=27 // pred_region
          %236 = vst [vmem:[%s225] sm:$0xff] 0.0
        $region40: #{tpu_custom_call.1} parent=27 // pred_fallthru
          _
        %v237 = vld [vmem:[%s191] sm:$0xff]
        %v238 = vld [vmem:[%s200] sm:$0xff]
        %v239 = vand.u32 2147483647, %v237
        %v240 = vsub.f32 0.0, %v239
        %v241 = vmul.f32 %v240, 1.442695
        %v242 = vpow.pop %v241
        %v243 = vadd.f32 %v242, 1.0
        %v244 = vrcp.pop %v243
        %v245 = vmul.f32 %v243, %v244
        %v246 = vsub.f32 2.0, %v245
        %v247 = vmul.f32 %v244, %v246
        %vm248 = vcmp.ge.f32.partialorder %v237, 0.0
        %v249 = vmul.f32 %v242, %v247
        %v250 = vsel %vm248, %v247, %v249
        %v251 = vmax.f32 %v237, 0.0
        %v252 = vmul.f32 %v237, %v238
        %v253 = vsub.f32 %v251, %v252
        %v254 = vadd.f32 %v242, 1.0
        %v255 = vlog2.pop %v254
        %v256 = vmul.f32 %v255, 0.6931472
        %v257 = vmul.f32 -0.5, %v242
        %v258 = vadd.f32 %v257, 1.0
        %v259 = vmul.f32 %v258, %v242
        %v260 = vand.u32 2147483647, %v242
        %vm261 = vcmp.lt.f32.partialorder %v260, 0.0004427343
        %v262 = vsel %vm261, %v259, %v256
        %v263 = vadd.f32 %v253, %v262
        %v264 = vmul.f32 %v250, 2.0
        %v265 = vsub.f32 1.0, %v264
        %v266 = vmul.f32 %v238, %v265
        %v267 = vadd.f32 %v250, %v266
        %v268 = vmax.f32 %v267, 0.0
        %v269 = vrsqrt.pop %v268
        %v270 = vmul.f32 %v268, %v269
        %vm271 = vcmp.eq.f32.partialorder %v268, inf
        %v272 = vsel %vm271, %v268, %v270
        %vm273 = vcmp.eq.f32.partialorder %v268, 0.0
        %v274 = vand.u32 %v268, 2147483648
        %v275 = vsel %vm273, %v274, %v272
        %v276 = vmul.f32 %v268, %v275
        %v277 = vmul.f32 %v238, -0.5
        %v278 = vadd.f32 %v277, 0.75
        %v279 = vmul.f32 %v278, %v276
        %v280 = vmul.f32 %v263, %v279
        %v281 = vadd.f32 %v280, 0.0
        %v282 = vld [vmem:[%s225] sm:$0xff]
        %v283 = vadd.f32 %v282, %v281
        %284 = vst [vmem:[%s225] sm:$0xff] %v283
        %s285 = sand.u32 %s106, 1
        %s286 = scalar_lea.sflag [#allocation4], %s285
        %s287 = sand.u32 %s106, 1
        %s288 = smul.addr %s287, 8
        %s289 = scalar_lea.vmem [#allocation7], %s288
        // Predicated region
        $region41: #{tpu_custom_call.1} parent=27 // pred_check
          %p290 = pneg %p116
        $region42: #{tpu_custom_call.1} parent=27 // pred_check_branch
          %292 = sbr.rel (%p290) target = $region44
        $region43: #{tpu_custom_call.1} parent=27 // pred_region
          %s294 = ssub.s32 128, 128
          %295 = vsyncadd %s286, %s294
          %s296 = smul.addr %s26, 128
          %s297 = scalar_lea.hbm %s2, %s296
          %s299 = sshll.u32 %s289, 4
          %s300 = int_to_ptr.vmem [resolvable:$true] %s299
          %302 = dma.vmem_to_hbm [thread:$0]  %s300, 128, %s297, %s286
        $region44: #{tpu_custom_call.1} parent=27 // pred_fallthru
          _
      $region28: #{tpu_custom_call.1} parent=5 // pred_fallthru
        _
      %p303 = scmp.le.s32.totalorder 2, %s17
      // Predicated region
      $region45: #{tpu_custom_call.1} parent=5 // pred_check
        %p304 = pneg %p303
      $region46: #{tpu_custom_call.1} parent=5 // pred_check_branch
        %306 = sbr.rel (%p304) target = $region48
      $region47: #{tpu_custom_call.1} parent=5 // pred_region
        %s307 = ssub.s32 %s17, 2
        // Predicated region
        $region49: #{tpu_custom_call.1} parent=47 // pred_check
          %p308 = pneg %p122
        $region50: #{tpu_custom_call.1} parent=47 // pred_check_branch
          %310 = sbr.rel (%p308) target = $region52
        $region51: #{tpu_custom_call.1} parent=47 // pred_region
          %s311 = sand.u32 %s107, 1
          %s312 = scalar_lea.sflag [#allocation4], %s311
          %s313 = sand.u32 %s107, 1
          %s314 = smul.addr %s313, 8
          %s315 = scalar_lea.vmem [#allocation7], %s314
          %316 = dma.done %s312, 128
        $region52: #{tpu_custom_call.1} parent=47 // pred_fallthru
          _
      $region48: #{tpu_custom_call.1} parent=5 // pred_fallthru
        _
    $region6: #{tpu_custom_call.1} parent=1 // loop_footer
      %s21 = sadd.s32 1, %s17
    $region7: #{tpu_custom_call.1} parent=1 // loop_footer_branch
      %16 = sbr.rel target = $region3
    $region8: #{tpu_custom_call.1} parent=1 // loop_exit
      _
    %317 = vsyncpa [#allocation3], 1
    %s318 = scalar_lea.sflag [#allocation3], 1
    %319 = vsyncpa %s318, 1
    %320 = vsyncpa [#allocation6], 1
    %s321 = scalar_lea.sflag [#allocation6], 1
    %322 = vsyncpa %s321, 1
    %323 = vsyncpa [#allocation4], 1
    %s324 = scalar_lea.sflag [#allocation4], 1
    %325 = vsyncpa %s324, 1

</llo_original>
